<compile_context>
chip_gen: v5e
topology: v5e:2x2
jax: 0.10.0
libtpu: 0.0.40
codegen_flags: <defaults>
</compile_context>

<pallas_src>
import functools

import jax
import jax.numpy as jnp
from jax.experimental import pallas as pl
from jax.experimental.pallas import tpu as pltpu

_NEG_BIG = -1e30  # finite "-inf" so exp()/max() never produce NaN


def _round_up(x, m):
    return (x + m - 1) // m * m


def glimpse_kernel(e_ref, cov_col_ref, cov_in_ref, z_ref,
                   w1_ref, b1_ref, w2_ref, b2_ref, wc_ref, bc_ref, v_ref,
                   ctx_ref, cov_out_ref,
                   bias_scr, m_scr, l_scr, acc_scr, logit_scr,
                   *, n_valid, tn, mxu_dtype, pre_dtype):
    t = pl.program_id(0)          # sentence tile
    nt = pl.num_programs(0)

    @pl.when(t == 0)
    def _init():
        # Fold every row-constant term into one bias row, computed once:
        #   bias = b1 + lstm_output @ w2 + b2 + bc   (bv cancels under softmax(dim=0))
        z2 = jnp.dot(z_ref[...], w2_ref[...], preferred_element_type=jnp.float32)
        bias_scr[...] = z2 + b1_ref[...] + b2_ref[...] + bc_ref[...]
        m_scr[...] = jnp.full_like(m_scr, _NEG_BIG)
        l_scr[...] = jnp.zeros_like(l_scr)
        acc_scr[...] = jnp.zeros_like(acc_scr)

    # ---- streaming phase: one (TN, E_pad) tile of encoded sentences --------------
    # w_h = e @ w1 (bare, b1 folded out); bf16 operands, f32 MXU accumulation.
    w_h = jnp.dot(e_ref[...], w1_ref[...], preferred_element_type=jnp.float32)
    # wc term: per-row coverage scalar broadcast against the wc row; tanh computed in
    # pre_dtype (bf16 on v6e/v7x halves EUP work; pass f32 on v5e).
    pre = jnp.tanh(
        (w_h + cov_col_ref[...] * wc_ref[...] + bias_scr[...]).astype(pre_dtype))
    # Logits as a lane-dense row: (1, O_pad) . (TN, O_pad)^T -> (1, TN)
    # (full-lane-width MXU output, no lane<->sublane relayout).
    logits = jax.lax.dot_general(
        v_ref[...], pre.astype(mxu_dtype),
        dimension_numbers=(((1,), (1,)), ((), ())),
        preferred_element_type=jnp.float32)                         # (1, TN)

    # Mask padded document rows.
    col = jax.lax.broadcasted_iota(jnp.int32, (1, tn), 1) + t * tn
    logits = jnp.where(col < n_valid, logits, jnp.float32(_NEG_BIG))
    logit_scr[pl.ds(t, 1), :] = logits                              # stash for finalize

    # Online softmax statistics + unnormalized context accumulation.
    m_prev = m_scr[...]                                             # (1, 1)
    m_new = jnp.maximum(m_prev, jnp.max(logits, axis=-1, keepdims=True))
    corr = jnp.exp(m_prev - m_new)
    p = jnp.exp(logits - m_new)                                     # (1, TN)
    l_scr[...] = corr * l_scr[...] + jnp.sum(p, axis=-1, keepdims=True)
    acc_scr[...] = corr * acc_scr[...] + jnp.dot(
        p.astype(mxu_dtype), w_h.astype(mxu_dtype),
        preferred_element_type=jnp.float32)                         # (1, O_pad)
    m_scr[...] = m_new

    @pl.when(t == nt - 1)
    def _finalize():
        # Exact reciprocal: coverage accumulates across decoder steps, so the
        # ~2^-12 approx error of the EUP reciprocal must not compound.
        inv_l = 1.0 / l_scr[...]                                    # (1, 1)
        # Attention for ALL tiles at once from the stashed lane-dense logits.
        att = jnp.exp(logit_scr[...] - m_scr[...]) * inv_l          # (T, TN)
        cov_out_ref[...] = (cov_in_ref[...] + att).astype(cov_out_ref.dtype)
        # b1 folded back in: att sums to 1 over valid rows.
        ctx_ref[...] = (acc_scr[...] * inv_l + b1_ref[...]).astype(ctx_ref.dtype)


def glimpse_forward(encoded_sentences, lstm_output, coverage_vector, params,
                    *, tile_n=256, mxu_dtype=jnp.bfloat16, pre_dtype=None):
    """Returns (context_vector [output_size], new_coverage [num_sent, 1]).

    mxu_dtype: dtype fed to the MXU (and the dtype e/w1/w2/v are streamed in).
    pre_dtype: dtype of the tanh pre-activation math.  Defaults to mxu_dtype
               (good on v6e/v7x); pass jnp.float32 on v5e (no bf16 VPU/EUP there).
    """
    assert tile_n % 128 == 0, "tile_n must be a multiple of 128"
    f32 = jnp.float32
    if pre_dtype is None:
        pre_dtype = mxu_dtype

    N, E = encoded_sentences.shape
    L = lstm_output.shape[-1]
    O = params["w1"].shape[1]

    TN = min(tile_n, _round_up(max(N, 1), 128))   # sentence-axis tile
    E_pad = _round_up(E, 128)
    O_pad = _round_up(O, 128)
    N_pad = _round_up(max(N, 1), TN)
    T = N_pad // TN

    # --- pad + cast to the MXU dtype in one pass (half the bytes of f32) ----------
    if (N_pad, E_pad) == (N, E):
        e_pad = encoded_sentences.astype(mxu_dtype)
    else:
        e_pad = (jnp.zeros((N_pad, E_pad), mxu_dtype)
                 .at[:N, :E].set(encoded_sentences.astype(mxu_dtype)))

    cov_flat = coverage_vector.astype(f32).reshape(N)
    cov_col = jnp.zeros((N_pad, 1), f32).at[:N, 0].set(cov_flat)          # wc term
    cov_tiles = (jnp.zeros((T * TN,), f32).at[:N].set(cov_flat)
                 .reshape(T, TN))                                         # aliased out
    z_row = lstm_output.astype(mxu_dtype).reshape(1, L)

    def pad2(w, r, c, dt):
        w = jnp.asarray(w, dt)
        if w.shape == (r, c):
            return w
        return jnp.zeros((r, c), dt).at[:w.shape[0], :w.shape[1]].set(w)

    w1 = pad2(params["w1"], E_pad, O_pad, mxu_dtype)
    w2 = pad2(params["w2"], L, O_pad, mxu_dtype)
    v_row = pad2(jnp.asarray(params["v"]).reshape(1, O), 1, O_pad, mxu_dtype)
    b1 = pad2(params["b1"], 1, O_pad, f32)
    b2 = pad2(params["b2"], 1, O_pad, f32)
    wc = pad2(params["wc"], 1, O_pad, f32)
    bc = pad2(params["bc"], 1, O_pad, f32)
    # bv is intentionally dropped: a scalar added to every logit cancels in softmax(dim=0).

    kernel = functools.partial(glimpse_kernel, n_valid=N, tn=TN,
                               mxu_dtype=mxu_dtype, pre_dtype=pre_dtype)

    const = lambda t: (0, 0)                       # resident weights / slabs
    in_specs = [
        pl.BlockSpec((TN, E_pad), lambda t: (t, 0)),   # encoded sentences (streamed)
        pl.BlockSpec((TN, 1), lambda t: (t, 0)),       # coverage column   (streamed)
        pl.BlockSpec((T, TN), const),                  # coverage, lane-dense (resident)
        pl.BlockSpec((1, L), const),                   # lstm output
        pl.BlockSpec((E_pad, O_pad), const),           # w1
        pl.BlockSpec((1, O_pad), const),               # b1
        pl.BlockSpec((L, O_pad), const),               # w2
        pl.BlockSpec((1, O_pad), const),               # b2
        pl.BlockSpec((1, O_pad), const),               # wc
        pl.BlockSpec((1, O_pad), const),               # bc
        pl.BlockSpec((1, O_pad), const),               # v (row)
    ]
    out_specs = (
        pl.BlockSpec((1, O_pad), const),               # context
        pl.BlockSpec((T, TN), const),                  # new coverage (lane-dense)
    )

    ctx, cov_new = pl.pallas_call(
        kernel,
        grid=(T,),
        in_specs=in_specs,
        out_specs=out_specs,
        out_shape=(jax.ShapeDtypeStruct((1, O_pad), f32),
                   jax.ShapeDtypeStruct((T, TN), f32)),
        scratch_shapes=[
            pltpu.VMEM((1, O_pad), f32),   # folded bias row (b1 + z@w2 + b2 + bc)
            pltpu.VMEM((1, 1), f32),       # running max m
            pltpu.VMEM((1, 1), f32),       # running denom l
            pltpu.VMEM((1, O_pad), f32),   # unnormalized context accumulator
            pltpu.VMEM((T, TN), f32),      # stashed lane-dense logits (one row / tile)
        ],
        # coverage slab is updated in place (input 2 <-> output 1)
        input_output_aliases={2: 1},
        compiler_params=pltpu.CompilerParams(
            # single grid axis carries the online-softmax state
            dimension_semantics=("arbitrary",),
            # 32 MiB stays safe on v5e/v6e (128 MiB) and on v7x (64 MiB/TC).
            vmem_limit_bytes=32 * 1024 * 1024),
    )(e_pad, cov_col, cov_tiles, z_row, w1, b1, w2, b2, wc, bc, v_row)

    context_vector = ctx[0, :O]                          # context_vector.squeeze()
    new_coverage = cov_new.reshape(N_pad)[:N].reshape(N, 1)
    return context_vector, new_coverage


def glimpse_reference(encoded_sentences, lstm_output, coverage_vector, params):
    """Pure-JAX reference mirroring the PyTorch forward (keeps bv)."""
    w_h = encoded_sentences @ params["w1"] + params["b1"]
    z2 = lstm_output.reshape(1, -1) @ params["w2"] + params["b2"]
    wc = coverage_vector * params["wc"] + params["bc"]
    logits = jnp.tanh(w_h + z2 + wc) @ params["v"] + params["bv"]
    att = jax.nn.softmax(logits, axis=0)
    cov_new = coverage_vector + att
    ctx = (att.T @ w_h).reshape(-1)
    return ctx, cov_new


def init_params(key, encoder_dim, lstm_dim, output_size):
    ks = jax.random.split(key, 8)

    def lin(kw, kb, fan_in, fan_out):
        bound = 1.0 / jnp.sqrt(fan_in)
        w = jax.random.uniform(kw, (fan_in, fan_out), jnp.float32, -bound, bound)
        b = jax.random.uniform(kb, (1, fan_out), jnp.float32, -bound, bound)
        return w, b

    w1, b1 = lin(ks[0], ks[1], encoder_dim, output_size)   # nn.Linear(encoder_dim, output_size)
    w2, b2 = lin(ks[2], ks[3], lstm_dim, output_size)      # nn.Linear(lstm_dim, output_size)
    wc, bc = lin(ks[4], ks[5], 1, output_size)             # nn.Linear(1, output_size)
    v, bv = lin(ks[6], ks[7], output_size, 1)              # nn.Linear(output_size, 1)
    return {"w1": w1, "b1": b1, "w2": w2, "b2": b2,
            "wc": wc, "bc": bc, "v": v, "bv": bv}


if __name__ == "__main__":
    def run_case(num_sent, encoder_dim, lstm_dim, output_size, tile_n, mxu_dtype, tol,
                 pre_dtype=None):
        key = jax.random.PRNGKey(0)
        k_enc, k_lstm, k_cov, k_par = jax.random.split(key, 4)
        enc = jax.random.normal(k_enc, (num_sent, encoder_dim), jnp.float32)
        lstm_out = jax.random.normal(k_lstm, (lstm_dim,), jnp.float32)
        cov = jax.random.uniform(k_cov, (num_sent, 1), jnp.float32)
        params = init_params(k_par, encoder_dim, lstm_dim, output_size)

        ctx, cov_new = glimpse_forward(enc, lstm_out, cov, params, tile_n=tile_n,
                                       mxu_dtype=mxu_dtype, pre_dtype=pre_dtype)
        jax.block_until_ready((ctx, cov_new))

        ctx_ref, cov_ref = glimpse_reference(enc, lstm_out, cov, params)
        assert ctx.shape == (output_size,)
        assert cov_new.shape == (num_sent, 1)
        assert jnp.allclose(ctx, ctx_ref, atol=tol, rtol=tol)
        assert jnp.allclose(cov_new, cov_ref, atol=tol, rtol=tol)

    # 1) strict-precision path: f32 MXU operands, f32 elementwise math.
    run_case(8, 32, 32, 16, tile_n=128, mxu_dtype=jnp.float32, tol=1e-4)
    # 2) default fast path on toy shapes: bf16 stream + bf16 tanh, single tile.
    run_case(8, 32, 32, 16, tile_n=256, mxu_dtype=jnp.bfloat16, tol=5e-2)
    # 3) multi-tile path (2 sentence tiles of 256, padded last tile) exercising the
    #    online softmax, padding mask and lane-dense aliased coverage writeback.
    run_case(300, 160, 96, 80, tile_n=256, mxu_dtype=jnp.bfloat16, tol=5e-2)
    # 4) v5e-style config: bf16 MXU operands but f32 elementwise / tanh math.
    run_case(300, 160, 96, 80, tile_n=256, mxu_dtype=jnp.bfloat16, tol=5e-2,
             pre_dtype=jnp.float32)

    print("KERNEL_OK")
</pallas_src>

<mosaic_0001>
module attributes {stable_mosaic.version = 11 : i64} {
  func.func @glimpse_kernel(%arg0: i32, %arg1: memref<128x128xf32, #tpu.memory_space<vmem>>, %arg2: memref<128x1xf32, #tpu.memory_space<vmem>>, %arg3: memref<1x128xf32, #tpu.memory_space<vmem>>, %arg4: memref<1x32xf32, #tpu.memory_space<vmem>>, %arg5: memref<128x128xf32, #tpu.memory_space<vmem>>, %arg6: memref<1x128xf32, #tpu.memory_space<vmem>>, %arg7: memref<32x128xf32, #tpu.memory_space<vmem>>, %arg8: memref<1x128xf32, #tpu.memory_space<vmem>>, %arg9: memref<1x128xf32, #tpu.memory_space<vmem>>, %arg10: memref<1x128xf32, #tpu.memory_space<vmem>>, %arg11: memref<1x128xf32, #tpu.memory_space<vmem>>, %arg12: memref<1x128xf32, #tpu.memory_space<vmem>>, %arg13: memref<1x128xf32, #tpu.memory_space<vmem>>, %arg14: memref<1x128xf32, #tpu.memory_space<vmem>>, %arg15: memref<1x1xf32, #tpu.memory_space<vmem>>, %arg16: memref<1x1xf32, #tpu.memory_space<vmem>>, %arg17: memref<1x128xf32, #tpu.memory_space<vmem>>, %arg18: memref<1x128xf32, #tpu.memory_space<vmem>>) attributes {dimension_semantics = [#tpu.dimension_semantics<arbitrary>], iteration_bounds = array<i64: 1>, scalar_prefetch = 0 : i64, scratch_operands = 5 : i64, tpu.core_type = #tpu.core_type<tc>, window_params = [{transform_indices = @transform_0, window_bounds = array<i64: 128, 128>}, {transform_indices = @transform_1, window_bounds = array<i64: 128, 1>}, {pipeline_mode = #tpu.pipeline_mode<synchronous>, transform_indices = @transform_2, window_bounds = array<i64: 1, 128>}, {pipeline_mode = #tpu.pipeline_mode<synchronous>, transform_indices = @transform_3, window_bounds = array<i64: 1, 32>}, {pipeline_mode = #tpu.pipeline_mode<synchronous>, transform_indices = @transform_4, window_bounds = array<i64: 128, 128>}, {pipeline_mode = #tpu.pipeline_mode<synchronous>, transform_indices = @transform_5, window_bounds = array<i64: 1, 128>}, {pipeline_mode = #tpu.pipeline_mode<synchronous>, transform_indices = @transform_6, window_bounds = array<i64: 32, 128>}, {pipeline_mode = #tpu.pipeline_mode<synchronous>, transform_indices = @transform_7, window_bounds = array<i64: 1, 128>}, {pipeline_mode = #tpu.pipeline_mode<synchronous>, transform_indices = @transform_8, window_bounds = array<i64: 1, 128>}, {pipeline_mode = #tpu.pipeline_mode<synchronous>, transform_indices = @transform_9, window_bounds = array<i64: 1, 128>}, {pipeline_mode = #tpu.pipeline_mode<synchronous>, transform_indices = @transform_10, window_bounds = array<i64: 1, 128>}, {pipeline_mode = #tpu.pipeline_mode<synchronous>, transform_indices = @transform_11, window_bounds = array<i64: 1, 128>}, {pipeline_mode = #tpu.pipeline_mode<synchronous>, transform_indices = @transform_12, window_bounds = array<i64: 1, 128>}]} {
    %c0_i32 = arith.constant 0 : i32
    %0 = arith.cmpi eq, %arg0, %c0_i32 : i32
    %1 = arith.extui %0 : i1 to i32
    %c0_i32_0 = arith.constant 0 : i32
    %2 = arith.cmpi ne, %1, %c0_i32_0 : i32
    scf.if %2 {
      %c0_32 = arith.constant 0 : index
      %c0_33 = arith.constant 0 : index
      %53 = vector.load %arg4[%c0_32, %c0_33] : memref<1x32xf32, #tpu.memory_space<vmem>>, vector<1x32xf32>
      %c0_34 = arith.constant 0 : index
      %c0_35 = arith.constant 0 : index
      %54 = vector.load %arg7[%c0_34, %c0_35] : memref<32x128xf32, #tpu.memory_space<vmem>>, vector<32x128xf32>
      %cst_36 = arith.constant dense<0.000000e+00> : vector<1x128xf32>
      %55 = tpu.matmul %53, %54, %cst_36 {dimension_numbers = #tpu.dot_dimension_numbers<[1], [0], [0], [1], [0, 0, 1, 1], [], []>} : vector<1x32xf32>, vector<32x128xf32>, vector<1x128xf32> -> vector<1x128xf32>
      %c0_37 = arith.constant 0 : index
      %c0_38 = arith.constant 0 : index
      %56 = vector.load %arg6[%c0_37, %c0_38] : memref<1x128xf32, #tpu.memory_space<vmem>>, vector<1x128xf32>
      %57 = arith.addf %55, %56 : vector<1x128xf32>
      %c0_39 = arith.constant 0 : index
      %c0_40 = arith.constant 0 : index
      %58 = vector.load %arg8[%c0_39, %c0_40] : memref<1x128xf32, #tpu.memory_space<vmem>>, vector<1x128xf32>
      %59 = arith.addf %57, %58 : vector<1x128xf32>
      %c0_41 = arith.constant 0 : index
      %c0_42 = arith.constant 0 : index
      %60 = vector.load %arg10[%c0_41, %c0_42] : memref<1x128xf32, #tpu.memory_space<vmem>>, vector<1x128xf32>
      %61 = arith.addf %59, %60 : vector<1x128xf32>
      %c0_43 = arith.constant 0 : index
      %c0_44 = arith.constant 0 : index
      %62 = vector.load %arg14[%c0_43, %c0_44] : memref<1x128xf32, #tpu.memory_space<vmem>>, vector<1x128xf32>
      tpu.vector_store %arg14[%c0_43, %c0_44], %61 {strides = array<i32>} : memref<1x128xf32, #tpu.memory_space<vmem>>, vector<1x128xf32>,
      %cst_45 = arith.constant -1.000000e+30 : f32
      %63 = vector.broadcast %cst_45 : f32 to vector<1x1xf32>
      %c0_46 = arith.constant 0 : index
      %c0_47 = arith.constant 0 : index
      %64 = vector.load %arg15[%c0_46, %c0_47] : memref<1x1xf32, #tpu.memory_space<vmem>>, vector<1x1xf32>
      tpu.vector_store %arg15[%c0_46, %c0_47], %63 {strides = array<i32>} : memref<1x1xf32, #tpu.memory_space<vmem>>, vector<1x1xf32>,
      %cst_48 = arith.constant 0.000000e+00 : f32
      %65 = vector.broadcast %cst_48 : f32 to vector<1x1xf32>
      %c0_49 = arith.constant 0 : index
      %c0_50 = arith.constant 0 : index
      %66 = vector.load %arg16[%c0_49, %c0_50] : memref<1x1xf32, #tpu.memory_space<vmem>>, vector<1x1xf32>
      tpu.vector_store %arg16[%c0_49, %c0_50], %65 {strides = array<i32>} : memref<1x1xf32, #tpu.memory_space<vmem>>, vector<1x1xf32>,
      %cst_51 = arith.constant 0.000000e+00 : f32
      %67 = vector.broadcast %cst_51 : f32 to vector<1x128xf32>
      %c0_52 = arith.constant 0 : index
      %c0_53 = arith.constant 0 : index
      %68 = vector.load %arg17[%c0_52, %c0_53] : memref<1x128xf32, #tpu.memory_space<vmem>>, vector<1x128xf32>
      tpu.vector_store %arg17[%c0_52, %c0_53], %67 {strides = array<i32>} : memref<1x128xf32, #tpu.memory_space<vmem>>, vector<1x128xf32>,
    } else {
    }
    %c0 = arith.constant 0 : index
    %c0_1 = arith.constant 0 : index
    %3 = vector.load %arg1[%c0, %c0_1] : memref<128x128xf32, #tpu.memory_space<vmem>>, vector<128x128xf32>
    %c0_2 = arith.constant 0 : index
    %c0_3 = arith.constant 0 : index
    %4 = vector.load %arg5[%c0_2, %c0_3] : memref<128x128xf32, #tpu.memory_space<vmem>>, vector<128x128xf32>
    %cst = arith.constant dense<0.000000e+00> : vector<128x128xf32>
    %5 = tpu.matmul %3, %4, %cst {dimension_numbers = #tpu.dot_dimension_numbers<[1], [0], [0], [1], [0, 0, 1, 1], [], []>} : vector<128x128xf32>, vector<128x128xf32>, vector<128x128xf32> -> vector<128x128xf32>
    %c0_4 = arith.constant 0 : index
    %c0_5 = arith.constant 0 : index
    %6 = vector.load %arg2[%c0_4, %c0_5] : memref<128x1xf32, #tpu.memory_space<vmem>>, vector<128x1xf32>
    %c0_6 = arith.constant 0 : index
    %c0_7 = arith.constant 0 : index
    %7 = vector.load %arg9[%c0_6, %c0_7] : memref<1x128xf32, #tpu.memory_space<vmem>>, vector<1x128xf32>
    %8 = vector.broadcast %6 : vector<128x1xf32> to vector<128x128xf32>
    %9 = vector.broadcast %7 : vector<1x128xf32> to vector<128x128xf32>
    %10 = arith.mulf %8, %9 : vector<128x128xf32>
    %11 = arith.addf %5, %10 : vector<128x128xf32>
    %c0_8 = arith.constant 0 : index
    %c0_9 = arith.constant 0 : index
    %12 = vector.load %arg14[%c0_8, %c0_9] : memref<1x128xf32, #tpu.memory_space<vmem>>, vector<1x128xf32>
    %13 = vector.broadcast %12 : vector<1x128xf32> to vector<128x128xf32>
    %14 = arith.addf %11, %13 : vector<128x128xf32>
    %15 = math.tanh %14 : vector<128x128xf32>
    %c0_10 = arith.constant 0 : index
    %c0_11 = arith.constant 0 : index
    %16 = vector.load %arg11[%c0_10, %c0_11] : memref<1x128xf32, #tpu.memory_space<vmem>>, vector<1x128xf32>
    %cst_12 = arith.constant dense<0.000000e+00> : vector<1x128xf32>
    %17 = tpu.matmul %16, %15, %cst_12 {dimension_numbers = #tpu.dot_dimension_numbers<[1], [1], [0], [0], [0, 0, 1, 0], [], []>} : vector<1x128xf32>, vector<128x128xf32>, vector<1x128xf32> -> vector<1x128xf32>
    %18 = tpu.iota {dimensions = array<i32: 1>} : vector<1x128xi32>
    %c128_i32 = arith.constant 128 : i32
    %19 = arith.muli %arg0, %c128_i32 : i32
    %20 = vector.broadcast %19 : i32 to vector<1x128xi32>
    %21 = arith.addi %18, %20 : vector<1x128xi32>
    %c8_i32 = arith.constant 8 : i32
    %22 = vector.broadcast %c8_i32 : i32 to vector<1x128xi32>
    %23 = arith.cmpi slt, %21, %22 : vector<1x128xi32>
    %cst_13 = arith.constant -1.000000e+30 : f32
    %24 = vector.broadcast %cst_13 : f32 to vector<1x128xf32>
    %25 = arith.select %23, %17, %24 : vector<1x128xi1>, vector<1x128xf32>
    %26 = arith.index_cast %arg0 : i32 to index
    %c0_14 = arith.constant 0 : index
    %27 = vector.load %arg18[%26, %c0_14] : memref<1x128xf32, #tpu.memory_space<vmem>>, vector<1x128xf32>
    tpu.vector_store %arg18[%26, %c0_14], %25 {strides = array<i32>} : memref<1x128xf32, #tpu.memory_space<vmem>>, vector<1x128xf32>,
    %c0_15 = arith.constant 0 : index
    %c0_16 = arith.constant 0 : index
    %28 = vector.load %arg15[%c0_15, %c0_16] : memref<1x1xf32, #tpu.memory_space<vmem>>, vector<1x1xf32>
    %cst_17 = arith.constant dense<0xFF800000> : vector<1xf32>
    %29 = vector.multi_reduction <maximumf>, %25, %cst_17 [1] : vector<1x128xf32> to vector<1xf32>
    %30 = vector.shape_cast %29 : vector<1xf32> to vector<1x1xf32>
    %31 = arith.maximumf %28, %30 : vector<1x1xf32>
    %32 = arith.subf %28, %31 : vector<1x1xf32>
    %33 = math.exp %32 : vector<1x1xf32>
    %34 = vector.broadcast %31 : vector<1x1xf32> to vector<1x128xf32>
    %35 = arith.subf %25, %34 : vector<1x128xf32>
    %36 = math.exp %35 : vector<1x128xf32>
    %c0_18 = arith.constant 0 : index
    %c0_19 = arith.constant 0 : index
    %37 = vector.load %arg16[%c0_18, %c0_19] : memref<1x1xf32, #tpu.memory_space<vmem>>, vector<1x1xf32>
    %38 = arith.mulf %33, %37 : vector<1x1xf32>
    %cst_20 = arith.constant dense<0.000000e+00> : vector<1xf32>
    %39 = vector.multi_reduction <add>, %36, %cst_20 [1] : vector<1x128xf32> to vector<1xf32>
    %40 = vector.shape_cast %39 : vector<1xf32> to vector<1x1xf32>
    %41 = arith.addf %38, %40 : vector<1x1xf32>
    %c0_21 = arith.constant 0 : index
    %c0_22 = arith.constant 0 : index
    %42 = vector.load %arg16[%c0_21, %c0_22] : memref<1x1xf32, #tpu.memory_space<vmem>>, vector<1x1xf32>
    tpu.vector_store %arg16[%c0_21, %c0_22], %41 {strides = array<i32>} : memref<1x1xf32, #tpu.memory_space<vmem>>, vector<1x1xf32>,
    %c0_23 = arith.constant 0 : index
    %c0_24 = arith.constant 0 : index
    %43 = vector.load %arg17[%c0_23, %c0_24] : memref<1x128xf32, #tpu.memory_space<vmem>>, vector<1x128xf32>
    %44 = vector.broadcast %33 : vector<1x1xf32> to vector<1x128xf32>
    %45 = arith.mulf %44, %43 : vector<1x128xf32>
    %cst_25 = arith.constant dense<0.000000e+00> : vector<1x128xf32>
    %46 = tpu.matmul %36, %5, %cst_25 {dimension_numbers = #tpu.dot_dimension_numbers<[1], [0], [0], [1], [0, 0, 1, 1], [], []>} : vector<1x128xf32>, vector<128x128xf32>, vector<1x128xf32> -> vector<1x128xf32>
    %47 = arith.addf %45, %46 : vector<1x128xf32>
    %c0_26 = arith.constant 0 : index
    %c0_27 = arith.constant 0 : index
    %48 = vector.load %arg17[%c0_26, %c0_27] : memref<1x128xf32, #tpu.memory_space<vmem>>, vector<1x128xf32>
    tpu.vector_store %arg17[%c0_26, %c0_27], %47 {strides = array<i32>} : memref<1x128xf32, #tpu.memory_space<vmem>>, vector<1x128xf32>,
    %c0_28 = arith.constant 0 : index
    %c0_29 = arith.constant 0 : index
    %49 = vector.load %arg15[%c0_28, %c0_29] : memref<1x1xf32, #tpu.memory_space<vmem>>, vector<1x1xf32>
    tpu.vector_store %arg15[%c0_28, %c0_29], %31 {strides = array<i32>} : memref<1x1xf32, #tpu.memory_space<vmem>>, vector<1x1xf32>,
    %c0_i32_30 = arith.constant 0 : i32
    %50 = arith.cmpi eq, %arg0, %c0_i32_30 : i32
    %51 = arith.extui %50 : i1 to i32
    %c0_i32_31 = arith.constant 0 : i32
    %52 = arith.cmpi ne, %51, %c0_i32_31 : i32
    scf.if %52 {
      %c0_32 = arith.constant 0 : index
      %c0_33 = arith.constant 0 : index
      %53 = vector.load %arg16[%c0_32, %c0_33] : memref<1x1xf32, #tpu.memory_space<vmem>>, vector<1x1xf32>
      %cst_34 = arith.constant 1.000000e+00 : f32
      %54 = vector.broadcast %cst_34 : f32 to vector<1x1xf32>
      %55 = arith.divf %54, %53 : vector<1x1xf32>
      %c0_35 = arith.constant 0 : index
      %c0_36 = arith.constant 0 : index
      %56 = vector.load %arg18[%c0_35, %c0_36] : memref<1x128xf32, #tpu.memory_space<vmem>>, vector<1x128xf32>
      %c0_37 = arith.constant 0 : index
      %c0_38 = arith.constant 0 : index
      %57 = vector.load %arg15[%c0_37, %c0_38] : memref<1x1xf32, #tpu.memory_space<vmem>>, vector<1x1xf32>
      %58 = vector.broadcast %57 : vector<1x1xf32> to vector<1x128xf32>
      %59 = arith.subf %56, %58 : vector<1x128xf32>
      %60 = math.exp %59 : vector<1x128xf32>
      %61 = vector.broadcast %55 : vector<1x1xf32> to vector<1x128xf32>
      %62 = arith.mulf %60, %61 : vector<1x128xf32>
      %c0_39 = arith.constant 0 : index
      %c0_40 = arith.constant 0 : index
      %63 = vector.load %arg3[%c0_39, %c0_40] : memref<1x128xf32, #tpu.memory_space<vmem>>, vector<1x128xf32>
      %64 = arith.addf %63, %62 : vector<1x128xf32>
      %c0_41 = arith.constant 0 : index
      %c0_42 = arith.constant 0 : index
      %65 = vector.load %arg13[%c0_41, %c0_42] : memref<1x128xf32, #tpu.memory_space<vmem>>, vector<1x128xf32>
      tpu.vector_store %arg13[%c0_41, %c0_42], %64 {strides = array<i32>} : memref<1x128xf32, #tpu.memory_space<vmem>>, vector<1x128xf32>,
      %c0_43 = arith.constant 0 : index
      %c0_44 = arith.constant 0 : index
      %66 = vector.load %arg17[%c0_43, %c0_44] : memref<1x128xf32, #tpu.memory_space<vmem>>, vector<1x128xf32>
      %67 = vector.broadcast %55 : vector<1x1xf32> to vector<1x128xf32>
      %68 = arith.mulf %66, %67 : vector<1x128xf32>
      %c0_45 = arith.constant 0 : index
      %c0_46 = arith.constant 0 : index
      %69 = vector.load %arg6[%c0_45, %c0_46] : memref<1x128xf32, #tpu.memory_space<vmem>>, vector<1x128xf32>
      %70 = arith.addf %68, %69 : vector<1x128xf32>
      %c0_47 = arith.constant 0 : index
      %c0_48 = arith.constant 0 : index
      %71 = vector.load %arg12[%c0_47, %c0_48] : memref<1x128xf32, #tpu.memory_space<vmem>>, vector<1x128xf32>
      tpu.vector_store %arg12[%c0_47, %c0_48], %70 {strides = array<i32>} : memref<1x128xf32, #tpu.memory_space<vmem>>, vector<1x128xf32>,
    } else {
    }
    return
  }
  func.func @transform_0(%arg0: i32) -> (i32, i32) {
    %c0_i32 = arith.constant 0 : i32
    %c0_i32_0 = arith.constant 0 : i32
    return %arg0, %c0_i32 : i32, i32
  }
  func.func @transform_1(%arg0: i32) -> (i32, i32) {
    %c0_i32 = arith.constant 0 : i32
    %c0_i32_0 = arith.constant 0 : i32
    return %arg0, %c0_i32 : i32, i32
  }
  func.func @transform_2(%arg0: i32) -> (i32, i32) {
    %c0_i32 = arith.constant 0 : i32
    %c0_i32_0 = arith.constant 0 : i32
    %c0_i32_1 = arith.constant 0 : i32
    return %c0_i32, %c0_i32_0 : i32, i32
  }
  func.func @transform_3(%arg0: i32) -> (i32, i32) {
    %c0_i32 = arith.constant 0 : i32
    %c0_i32_0 = arith.constant 0 : i32
    %c0_i32_1 = arith.constant 0 : i32
    return %c0_i32, %c0_i32_0 : i32, i32
  }
  func.func @transform_4(%arg0: i32) -> (i32, i32) {
    %c0_i32 = arith.constant 0 : i32
    %c0_i32_0 = arith.constant 0 : i32
    %c0_i32_1 = arith.constant 0 : i32
    return %c0_i32, %c0_i32_0 : i32, i32
  }
  func.func @transform_5(%arg0: i32) -> (i32, i32) {
    %c0_i32 = arith.constant 0 : i32
    %c0_i32_0 = arith.constant 0 : i32
    %c0_i32_1 = arith.constant 0 : i32
    return %c0_i32, %c0_i32_0 : i32, i32
  }
  func.func @transform_6(%arg0: i32) -> (i32, i32) {
    %c0_i32 = arith.constant 0 : i32
    %c0_i32_0 = arith.constant 0 : i32
    %c0_i32_1 = arith.constant 0 : i32
    return %c0_i32, %c0_i32_0 : i32, i32
  }
  func.func @transform_7(%arg0: i32) -> (i32, i32) {
    %c0_i32 = arith.constant 0 : i32
    %c0_i32_0 = arith.constant 0 : i32
    %c0_i32_1 = arith.constant 0 : i32
    return %c0_i32, %c0_i32_0 : i32, i32
  }
  func.func @transform_8(%arg0: i32) -> (i32, i32) {
    %c0_i32 = arith.constant 0 : i32
    %c0_i32_0 = arith.constant 0 : i32
    %c0_i32_1 = arith.constant 0 : i32
    return %c0_i32, %c0_i32_0 : i32, i32
  }
  func.func @transform_9(%arg0: i32) -> (i32, i32) {
    %c0_i32 = arith.constant 0 : i32
    %c0_i32_0 = arith.constant 0 : i32
    %c0_i32_1 = arith.constant 0 : i32
    return %c0_i32, %c0_i32_0 : i32, i32
  }
  func.func @transform_10(%arg0: i32) -> (i32, i32) {
    %c0_i32 = arith.constant 0 : i32
    %c0_i32_0 = arith.constant 0 : i32
    %c0_i32_1 = arith.constant 0 : i32
    return %c0_i32, %c0_i32_0 : i32, i32
  }
  func.func @transform_11(%arg0: i32) -> (i32, i32) {
    %c0_i32 = arith.constant 0 : i32
    %c0_i32_0 = arith.constant 0 : i32
    %c0_i32_1 = arith.constant 0 : i32
    return %c0_i32, %c0_i32_0 : i32, i32
  }
  func.func @transform_12(%arg0: i32) -> (i32, i32) {
    %c0_i32 = arith.constant 0 : i32
    %c0_i32_0 = arith.constant 0 : i32
    %c0_i32_1 = arith.constant 0 : i32
    return %c0_i32, %c0_i32_0 : i32, i32
  }
}

</mosaic_0001>

<llo_original>
// kernel: tpu_custom_call.1
$region0: #{tpu_custom_call.1}
  #allocation0 [shape = 'u32[]', space=smem, size = 0x4, offset = 0x4, fixed_abs, tag = 'smem constant byte address 0x4 - core index']
  #allocation1 [shape = 'u32[72,128]{1,0:T(1,128)}', space=vmem, size = 0x9000, scoped, tag = 'internal scratch']
  #allocation2 [shape = 'f32[1,128]{1,0:T(1,128)}', space=vmem, size = 0x200, scoped, tag = 'scratch operand']
  #allocation3 [shape = 'f32[1,1]{1,0:T(1,128)}', space=vmem, size = 0x200, scoped, tag = 'scratch operand']
  #allocation4 [shape = 'f32[1,1]{1,0:T(1,128)}', space=vmem, size = 0x200, scoped, tag = 'scratch operand']
  #allocation5 [shape = 'f32[1,128]{1,0:T(1,128)}', space=vmem, size = 0x200, scoped, tag = 'scratch operand']
  #allocation6 [shape = 'f32[1,128]{1,0:T(1,128)}', space=vmem, size = 0x200, scoped, tag = 'scratch operand']
  %s0 = inlined_call_operand.vmem [shape: f32[128,128], index: 0, kind: input, shape index: {}]
  %s1 = inlined_call_operand.vmem [shape: f32[128,1], index: 1, kind: input, shape index: {}]
  %s2 = inlined_call_operand.hbm [shape: f32[1,128], index: 2, kind: input, shape index: {}, may-alias: {2,12}]
  %s3 = inlined_call_operand.vmem [shape: f32[1,32], index: 3, kind: input, shape index: {}]
  %s4 = inlined_call_operand.hbm [shape: f32[128,128], index: 4, kind: input, shape index: {}]
  %s5 = inlined_call_operand.vmem [shape: f32[1,128], index: 5, kind: input, shape index: {}]
  %s6 = inlined_call_operand.hbm [shape: f32[32,128], index: 6, kind: input, shape index: {}]
  %s7 = inlined_call_operand.hbm [shape: f32[1,128], index: 7, kind: input, shape index: {}]
  %s8 = inlined_call_operand.hbm [shape: f32[1,128], index: 8, kind: input, shape index: {}]
  %s9 = inlined_call_operand.hbm [shape: f32[1,128], index: 9, kind: input, shape index: {}]
  %s10 = inlined_call_operand.hbm [shape: f32[1,128], index: 10, kind: input, shape index: {}]
  %s11 = inlined_call_operand.hbm [shape: f32[1,128], index: 11, kind: output, shape index: {0}]
  %s12 = inlined_call_operand.hbm [shape: f32[1,128], index: 12, kind: output, shape index: {1}, may-alias: {2,12}]
  %13 = xla_tuple %s11, %s12
  %s14 = sld [smem:[#allocation0]]
  $region98: #{tpu_custom_call.1} parent=0
    _
  %s16 = ssub.s32 1, %s14
  %s17 = scalar_select 0, %s16, %s14
  $region1: #{tpu_custom_call.1} parent=0
    #allocation7 [shape = 'u8[512]{0}', space=vmem, size = 0x400, scoped, tag = 'input window, operand 2, single buffered']
    #allocation8 [shape = 's32[1]{0}', space=sflag, size = 0x4, scoped, tag = 'scoped memory for tpu_custom_call.1']
    #allocation9 [shape = 's32[1]{0}', space=sflag, size = 0x4, scoped, tag = 'scoped memory for tpu_custom_call.1']
    #allocation10 [shape = 'u8[65536]{0}', space=vmem, size = 0x10000, scoped, tag = 'input window, operand 4, single buffered']
    #allocation11 [shape = 's32[1]{0}', space=sflag, size = 0x4, scoped, tag = 'scoped memory for tpu_custom_call.1']
    #allocation12 [shape = 'u8[16384]{0}', space=vmem, size = 0x4000, scoped, tag = 'input window, operand 6, single buffered']
    #allocation13 [shape = 'u8[512]{0}', space=vmem, size = 0x400, scoped, tag = 'input window, operand 7, single buffered']
    #allocation14 [shape = 's32[1]{0}', space=sflag, size = 0x4, scoped, tag = 'scoped memory for tpu_custom_call.1']
    #allocation15 [shape = 'u8[512]{0}', space=vmem, size = 0x400, scoped, tag = 'input window, operand 8, single buffered']
    #allocation16 [shape = 'u8[512]{0}', space=vmem, size = 0x400, scoped, tag = 'input window, operand 9, single buffered']
    #allocation17 [shape = 's32[1]{0}', space=sflag, size = 0x4, scoped, tag = 'scoped memory for tpu_custom_call.1']
    #allocation18 [shape = 'u8[512]{0}', space=vmem, size = 0x400, scoped, tag = 'input window, operand 10, single buffered']
    #allocation19 [shape = 'u8[512]{0}', space=vmem, size = 0x400, scoped, tag = 'output window, operand 0, single buffered']
    #allocation20 [shape = 'u8[512]{0}', space=vmem, size = 0x400, scoped, tag = 'output window, operand 1, single buffered']
    #allocation21 [shape = 's32[1]{0}', space=sflag, size = 0x4, scoped, tag = 'scoped memory for tpu_custom_call.1']
    %18 = vsyncpa [#allocation8], 0
    %19 = vsyncpa [#allocation11], 0
    %20 = vsyncpa [#allocation14], 0
    %21 = vsyncpa [#allocation17], 0
    %22 = vsyncpa [#allocation9], 0
    %23 = vsyncpa [#allocation21], 0
    // Predicated region
    $region2: #{tpu_custom_call.1} parent=1 // pred_check
      _
    $region3: #{tpu_custom_call.1} parent=1 // pred_check_branch
      %25 = sbr.rel (0) target = $region5
    $region4: #{tpu_custom_call.1} parent=1 // pred_region
      _
    $region5: #{tpu_custom_call.1} parent=1 // pred_fallthru
      _
    // Predicated region
    $region6: #{tpu_custom_call.1} parent=1 // pred_check
      _
    $region7: #{tpu_custom_call.1} parent=1 // pred_check_branch
      %27 = sbr.rel (0) target = $region9
    $region8: #{tpu_custom_call.1} parent=1 // pred_region
      _
    $region9: #{tpu_custom_call.1} parent=1 // pred_fallthru
      _
    // Predicated region
    $region10: #{tpu_custom_call.1} parent=1 // pred_check
      _
    $region11: #{tpu_custom_call.1} parent=1 // pred_check_branch
      %29 = sbr.rel (0) target = $region13
    $region12: #{tpu_custom_call.1} parent=1 // pred_region
      %31 = vsyncadd [#allocation8], 0
      %s33 = sshll.u32 %s2, 4
      %s34 = int_to_ptr.hbm [resolvable:$true] %s33
      %s35 = sshll.u32 [#allocation7], 4
      %s36 = int_to_ptr.vmem [resolvable:$true] %s35
      %38 = dma.hbm_to_vmem [thread:$0]  %s34, 16, %s36, [#allocation8]
    $region13: #{tpu_custom_call.1} parent=1 // pred_fallthru
      _
    // Predicated region
    $region14: #{tpu_custom_call.1} parent=1 // pred_check
      _
    $region15: #{tpu_custom_call.1} parent=1 // pred_check_branch
      %40 = sbr.rel (0) target = $region17
    $region16: #{tpu_custom_call.1} parent=1 // pred_region
      _
    $region17: #{tpu_custom_call.1} parent=1 // pred_fallthru
      _
    // Predicated region
    $region18: #{tpu_custom_call.1} parent=1 // pred_check
      _
    $region19: #{tpu_custom_call.1} parent=1 // pred_check_branch
      %42 = sbr.rel (0) target = $region21
    $region20: #{tpu_custom_call.1} parent=1 // pred_region
      %44 = vsyncadd [#allocation11], 0
      %s45 = sshll.u32 %s4, 4
      %s46 = int_to_ptr.hbm [resolvable:$true] %s45
      %s47 = sshll.u32 [#allocation10], 4
      %s48 = int_to_ptr.vmem [resolvable:$true] %s47
      %53 = dma.hbm_to_vmem [thread:$0]  %s46, 2048, %s48, [#allocation11], 128, 128, 8
    $region21: #{tpu_custom_call.1} parent=1 // pred_fallthru
      _
    // Predicated region
    $region22: #{tpu_custom_call.1} parent=1 // pred_check
      _
    $region23: #{tpu_custom_call.1} parent=1 // pred_check_branch
      %55 = sbr.rel (0) target = $region25
    $region24: #{tpu_custom_call.1} parent=1 // pred_region
      _
    $region25: #{tpu_custom_call.1} parent=1 // pred_fallthru
      _
    // Predicated region
    $region26: #{tpu_custom_call.1} parent=1 // pred_check
      _
    $region27: #{tpu_custom_call.1} parent=1 // pred_check_branch
      %57 = sbr.rel (0) target = $region29
    $region28: #{tpu_custom_call.1} parent=1 // pred_region
      %59 = vsyncadd [#allocation11], 0
      %s60 = sshll.u32 %s6, 4
      %s61 = int_to_ptr.hbm [resolvable:$true] %s60
      %s62 = sshll.u32 [#allocation12], 4
      %s63 = int_to_ptr.vmem [resolvable:$true] %s62
      %68 = dma.hbm_to_vmem [thread:$0]  %s61, 512, %s63, [#allocation11], 128, 128, 8
    $region29: #{tpu_custom_call.1} parent=1 // pred_fallthru
      _
    // Predicated region
    $region30: #{tpu_custom_call.1} parent=1 // pred_check
      _
    $region31: #{tpu_custom_call.1} parent=1 // pred_check_branch
      %70 = sbr.rel (0) target = $region33
    $region32: #{tpu_custom_call.1} parent=1 // pred_region
      %72 = vsyncadd [#allocation14], 0
      %s74 = sshll.u32 %s7, 4
      %s75 = int_to_ptr.hbm [resolvable:$true] %s74
      %s76 = sshll.u32 [#allocation13], 4
      %s77 = int_to_ptr.vmem [resolvable:$true] %s76
      %79 = dma.hbm_to_vmem [thread:$0]  %s75, 16, %s77, [#allocation14]
    $region33: #{tpu_custom_call.1} parent=1 // pred_fallthru
      _
    // Predicated region
    $region34: #{tpu_custom_call.1} parent=1 // pred_check
      _
    $region35: #{tpu_custom_call.1} parent=1 // pred_check_branch
      %81 = sbr.rel (0) target = $region37
    $region36: #{tpu_custom_call.1} parent=1 // pred_region
      %83 = vsyncadd [#allocation14], 0
      %s85 = sshll.u32 %s8, 4
      %s86 = int_to_ptr.hbm [resolvable:$true] %s85
      %s87 = sshll.u32 [#allocation15], 4
      %s88 = int_to_ptr.vmem [resolvable:$true] %s87
      %90 = dma.hbm_to_vmem [thread:$0]  %s86, 16, %s88, [#allocation14]
    $region37: #{tpu_custom_call.1} parent=1 // pred_fallthru
      _
    // Predicated region
    $region38: #{tpu_custom_call.1} parent=1 // pred_check
      _
    $region39: #{tpu_custom_call.1} parent=1 // pred_check_branch
      %92 = sbr.rel (0) target = $region41
    $region40: #{tpu_custom_call.1} parent=1 // pred_region
      %94 = vsyncadd [#allocation17], 0
      %s96 = sshll.u32 %s9, 4
      %s97 = int_to_ptr.hbm [resolvable:$true] %s96
      %s98 = sshll.u32 [#allocation16], 4
      %s99 = int_to_ptr.vmem [resolvable:$true] %s98
      %101 = dma.hbm_to_vmem [thread:$0]  %s97, 16, %s99, [#allocation17]
    $region41: #{tpu_custom_call.1} parent=1 // pred_fallthru
      _
    // Predicated region
    $region42: #{tpu_custom_call.1} parent=1 // pred_check
      _
    $region43: #{tpu_custom_call.1} parent=1 // pred_check_branch
      %103 = sbr.rel (0) target = $region45
    $region44: #{tpu_custom_call.1} parent=1 // pred_region
      %105 = vsyncadd [#allocation17], 0
      %s107 = sshll.u32 %s10, 4
      %s108 = int_to_ptr.hbm [resolvable:$true] %s107
      %s109 = sshll.u32 [#allocation18], 4
      %s110 = int_to_ptr.vmem [resolvable:$true] %s109
      %112 = dma.hbm_to_vmem [thread:$0]  %s108, 16, %s110, [#allocation17]
    $region45: #{tpu_custom_call.1} parent=1 // pred_fallthru
      _
    // Predicated region
    $region46: #{tpu_custom_call.1} parent=1 // pred_check
      _
    $region47: #{tpu_custom_call.1} parent=1 // pred_check_branch
      %114 = sbr.rel (0) target = $region49
    $region48: #{tpu_custom_call.1} parent=1 // pred_region
      %116 = dma.done [#allocation8], 16
    $region49: #{tpu_custom_call.1} parent=1 // pred_fallthru
      _
    // Predicated region
    $region50: #{tpu_custom_call.1} parent=1 // pred_check
      _
    $region51: #{tpu_custom_call.1} parent=1 // pred_check_branch
      %118 = sbr.rel (0) target = $region53
    $region52: #{tpu_custom_call.1} parent=1 // pred_region
      %120 = dma.done [#allocation11], 2048
    $region53: #{tpu_custom_call.1} parent=1 // pred_fallthru
      _
    // Predicated region
    $region54: #{tpu_custom_call.1} parent=1 // pred_check
      _
    $region55: #{tpu_custom_call.1} parent=1 // pred_check_branch
      %122 = sbr.rel (0) target = $region57
    $region56: #{tpu_custom_call.1} parent=1 // pred_region
      %124 = dma.done [#allocation11], 512
    $region57: #{tpu_custom_call.1} parent=1 // pred_fallthru
      _
    // Predicated region
    $region58: #{tpu_custom_call.1} parent=1 // pred_check
      _
    $region59: #{tpu_custom_call.1} parent=1 // pred_check_branch
      %126 = sbr.rel (0) target = $region61
    $region60: #{tpu_custom_call.1} parent=1 // pred_region
      %128 = dma.done [#allocation14], 16
    $region61: #{tpu_custom_call.1} parent=1 // pred_fallthru
      _
    // Predicated region
    $region62: #{tpu_custom_call.1} parent=1 // pred_check
      _
    $region63: #{tpu_custom_call.1} parent=1 // pred_check_branch
      %130 = sbr.rel (0) target = $region65
    $region64: #{tpu_custom_call.1} parent=1 // pred_region
      %132 = dma.done [#allocation14], 16
    $region65: #{tpu_custom_call.1} parent=1 // pred_fallthru
      _
    // Predicated region
    $region66: #{tpu_custom_call.1} parent=1 // pred_check
      _
    $region67: #{tpu_custom_call.1} parent=1 // pred_check_branch
      %134 = sbr.rel (0) target = $region69
    $region68: #{tpu_custom_call.1} parent=1 // pred_region
      %136 = dma.done [#allocation17], 16
    $region69: #{tpu_custom_call.1} parent=1 // pred_fallthru
      _
    // Predicated region
    $region70: #{tpu_custom_call.1} parent=1 // pred_check
      _
    $region71: #{tpu_custom_call.1} parent=1 // pred_check_branch
      %138 = sbr.rel (0) target = $region73
    $region72: #{tpu_custom_call.1} parent=1 // pred_region
      %140 = dma.done [#allocation17], 16
    $region73: #{tpu_custom_call.1} parent=1 // pred_fallthru
      _
    %p141 = scmp.eq.s32.totalorder 0, 0
    // Predicated region
    $region74: #{tpu_custom_call.1} parent=1 // pred_check
      %p142 = pneg %p141
    $region75: #{tpu_custom_call.1} parent=1 // pred_check_branch
      %144 = sbr.rel (%p142) target = $region77
    $region76: #{tpu_custom_call.1} parent=1 // pred_region
      %v145 = vld [vmem:[%s3] sm:$0x1]
      %v146 = vld [vmem:[#allocation12] sm:$0xff]
      %v147 = vld [vmem:[#allocation12 + $0x8] sm:$0xff]
      %v148 = vld [vmem:[#allocation12 + $0x10] sm:$0xff]
      %v149 = vld [vmem:[#allocation12 + $0x18] sm:$0xff]
      %v150 = vld [vmem:[%s5] sm:$0x1]
      %vm151 = vcmask 261120
      %v153 = vsel %vm151, %v145, 0
      %155 = vmatpush.msra.mxu0 0.0
      %156 = vmatpush.msra.mxu0 0.0
      %157 = vmatpush.msra.mxu0 0.0
      %158 = vmatpush.msra.mxu0 0.0
      %159 = vmatpush.msra.mxu0 0.0
      %160 = vmatpush.msra.mxu0 0.0
      %161 = vmatpush.msra.mxu0 0.0
      %162 = vmatpush.msra.mxu0 0.0
      %163 = vmatpush.msra.mxu0 0.0
      %164 = vmatpush.msra.mxu0 0.0
      %165 = vmatpush.msra.mxu0 0.0
      %166 = vmatpush.msra.mxu0 0.0
      %167 = vmatpush.msra.mxu0 %v149
      %168 = vmatpush.msra.mxu0 %v148
      %169 = vmatpush.msra.mxu0 %v147
      %170 = vmatpush.msra.mxu0 %v146
      %171 = vmatmul.f32.gmra.mxu0 %v153
      %v172 = vpop.f32.mrf.mxu0
      %v173 = vadd.f32 %v150, %v172
      %174 = vdwg.mxu0
      %v175 = vld [vmem:[#allocation13] sm:$0x1]
      %v176 = vadd.f32 %v173, %v175
      %v177 = vld [vmem:[#allocation16] sm:$0x1]
      %v178 = vadd.f32 %v176, %v177
      %179 = vst [vmem:[#allocation2] sm:$0x1] %v178
      %vm180 = vcmask 0
      %181 = vst.msk [vmem:[#allocation3] sm:$0x1] %vm180, -1e+30
      %182 = vst.msk [vmem:[#allocation4] sm:$0x1] %vm180, 0.0
      %183 = vst [vmem:[#allocation5] sm:$0x1] 0.0
    $region77: #{tpu_custom_call.1} parent=1 // pred_fallthru
      _
    %v184 = vld [vmem:[%s0] sm:$0xff]
    %v185 = vld [vmem:[%s0 + $0x8] sm:$0xff]
    %v186 = vld [vmem:[%s0 + $0x10] sm:$0xff]
    %v187 = vld [vmem:[%s0 + $0x18] sm:$0xff]
    %v188 = vld [vmem:[%s0 + $0x20] sm:$0xff]
    %v189 = vld [vmem:[%s0 + $0x28] sm:$0xff]
    %v190 = vld [vmem:[%s0 + $0x30] sm:$0xff]
    %v191 = vld [vmem:[%s0 + $0x38] sm:$0xff]
    %v192 = vld [vmem:[%s0 + $0x40] sm:$0xff]
    %v193 = vld [vmem:[%s0 + $0x48] sm:$0xff]
    %v194 = vld [vmem:[%s0 + $0x50] sm:$0xff]
    %v195 = vld [vmem:[%s0 + $0x58] sm:$0xff]
    %v196 = vld [vmem:[%s0 + $0x60] sm:$0xff]
    %v197 = vld [vmem:[%s0 + $0x68] sm:$0xff]
    %v198 = vld [vmem:[%s0 + $0x70] sm:$0xff]
    %v199 = vld [vmem:[%s0 + $0x78] sm:$0xff]
    %v200 = vld [vmem:[#allocation10] sm:$0xff]
    %v201 = vld [vmem:[#allocation10 + $0x8] sm:$0xff]
    %v202 = vld [vmem:[#allocation10 + $0x10] sm:$0xff]
    %v203 = vld [vmem:[#allocation10 + $0x18] sm:$0xff]
    %v204 = vld [vmem:[#allocation10 + $0x20] sm:$0xff]
    %v205 = vld [vmem:[#allocation10 + $0x28] sm:$0xff]
    %v206 = vld [vmem:[#allocation10 + $0x30] sm:$0xff]
    %v207 = vld [vmem:[#allocation10 + $0x38] sm:$0xff]
    %v208 = vld [vmem:[#allocation10 + $0x40] sm:$0xff]
    %v209 = vld [vmem:[#allocation10 + $0x48] sm:$0xff]
    %v210 = vld [vmem:[#allocation10 + $0x50] sm:$0xff]
    %v211 = vld [vmem:[#allocation10 + $0x58] sm:$0xff]
    %v212 = vld [vmem:[#allocation10 + $0x60] sm:$0xff]
    %v213 = vld [vmem:[#allocation10 + $0x68] sm:$0xff]
    %v214 = vld [vmem:[#allocation10 + $0x70] sm:$0xff]
    %v215 = vld [vmem:[#allocation10 + $0x78] sm:$0xff]
    %216 = vmatpush.msra.mxu0 %v215
    %217 = vmatpush.msra.mxu0 %v214
    %218 = vmatpush.msra.mxu0 %v213
    %219 = vmatpush.msra.mxu0 %v212
    %220 = vmatpush.msra.mxu0 %v211
    %221 = vmatpush.msra.mxu0 %v210
    %222 = vmatpush.msra.mxu0 %v209
    %223 = vmatpush.msra.mxu0 %v208
    %224 = vmatpush.msra.mxu0 %v207
    %225 = vmatpush.msra.mxu0 %v206
    %226 = vmatpush.msra.mxu0 %v205
    %227 = vmatpush.msra.mxu0 %v204
    %228 = vmatpush.msra.mxu0 %v203
    %229 = vmatpush.msra.mxu0 %v202
    %230 = vmatpush.msra.mxu0 %v201
    %231 = vmatpush.msra.mxu0 %v200
    %232 = vmatmul.f32.gmra.mxu0 %v184
    %v233 = vpop.f32.mrf.mxu0
    %v234 = vadd.f32 0.0, %v233
    %235 = vmatmul.f32.gmra.mxu0 %v185
    %v236 = vpop.f32.mrf.mxu0
    %v237 = vadd.f32 0.0, %v236
    %238 = vmatmul.f32.gmra.mxu0 %v186
    %v239 = vpop.f32.mrf.mxu0
    %v240 = vadd.f32 0.0, %v239
    %241 = vmatmul.f32.gmra.mxu0 %v187
    %v242 = vpop.f32.mrf.mxu0
    %v243 = vadd.f32 0.0, %v242
    %244 = vmatmul.f32.gmra.mxu0 %v188
    %v245 = vpop.f32.mrf.mxu0
    %v246 = vadd.f32 0.0, %v245
    %247 = vmatmul.f32.gmra.mxu0 %v189
    %v248 = vpop.f32.mrf.mxu0
    %v249 = vadd.f32 0.0, %v248
    %250 = vmatmul.f32.gmra.mxu0 %v190
    %v251 = vpop.f32.mrf.mxu0
    %v252 = vadd.f32 0.0, %v251
    %253 = vmatmul.f32.gmra.mxu0 %v191
    %v254 = vpop.f32.mrf.mxu0
    %v255 = vadd.f32 0.0, %v254
    %256 = vmatmul.f32.gmra.mxu0 %v192
    %v257 = vpop.f32.mrf.mxu0
    %v258 = vadd.f32 0.0, %v257
    %259 = vmatmul.f32.gmra.mxu0 %v193
    %v260 = vpop.f32.mrf.mxu0
    %v261 = vadd.f32 0.0, %v260
    %262 = vmatmul.f32.gmra.mxu0 %v194
    %v263 = vpop.f32.mrf.mxu0
    %v264 = vadd.f32 0.0, %v263
    %265 = vmatmul.f32.gmra.mxu0 %v195
    %v266 = vpop.f32.mrf.mxu0
    %v267 = vadd.f32 0.0, %v266
    %268 = vmatmul.f32.gmra.mxu0 %v196
    %v269 = vpop.f32.mrf.mxu0
    %v270 = vadd.f32 0.0, %v269
    %271 = vmatmul.f32.gmra.mxu0 %v197
    %v272 = vpop.f32.mrf.mxu0
    %v273 = vadd.f32 0.0, %v272
    %274 = vmatmul.f32.gmra.mxu0 %v198
    %v275 = vpop.f32.mrf.mxu0
    %v276 = vadd.f32 0.0, %v275
    %277 = vmatmul.f32.gmra.mxu0 %v199
    %v278 = vpop.f32.mrf.mxu0
    %v279 = vadd.f32 0.0, %v278
    %280 = vdwg.mxu0
    %v281 = vld [vmem:[%s1] sm:$0xff]
    %v282 = vld [vmem:[%s1 + $0x8] sm:$0xff]
    %v283 = vld [vmem:[%s1 + $0x10] sm:$0xff]
    %v284 = vld [vmem:[%s1 + $0x18] sm:$0xff]
    %v285 = vld [vmem:[%s1 + $0x20] sm:$0xff]
    %v286 = vld [vmem:[%s1 + $0x28] sm:$0xff]
    %v287 = vld [vmem:[%s1 + $0x30] sm:$0xff]
    %v288 = vld [vmem:[%s1 + $0x38] sm:$0xff]
    %v289 = vld [vmem:[%s1 + $0x40] sm:$0xff]
    %v290 = vld [vmem:[%s1 + $0x48] sm:$0xff]
    %v291 = vld [vmem:[%s1 + $0x50] sm:$0xff]
    %v292 = vld [vmem:[%s1 + $0x58] sm:$0xff]
    %v293 = vld [vmem:[%s1 + $0x60] sm:$0xff]
    %v294 = vld [vmem:[%s1 + $0x68] sm:$0xff]
    %v295 = vld [vmem:[%s1 + $0x70] sm:$0xff]
    %v296 = vld [vmem:[%s1 + $0x78] sm:$0xff]
    %v297 = vld [vmem:[#allocation15] sm:$0x1]
    %299 = vset.pattern.permute.xlu0 0
    %300 = vperm.xlu0 %299, %v281
    %v301 = vpop.permute.xlu0 %300
    %304 = vset.pattern.permute.xlu0 0
    %305 = vperm.xlu0 %304, %v282
    %v306 = vpop.permute.xlu0 %305
    %309 = vset.pattern.permute.xlu0 0
    %310 = vperm.xlu0 %309, %v283
    %v311 = vpop.permute.xlu0 %310
    %314 = vset.pattern.permute.xlu0 0
    %315 = vperm.xlu0 %314, %v284
    %v316 = vpop.permute.xlu0 %315
    %319 = vset.pattern.permute.xlu0 0
    %320 = vperm.xlu0 %319, %v285
    %v321 = vpop.permute.xlu0 %320
    %324 = vset.pattern.permute.xlu0 0
    %325 = vperm.xlu0 %324, %v286
    %v326 = vpop.permute.xlu0 %325
    %329 = vset.pattern.permute.xlu0 0
    %330 = vperm.xlu0 %329, %v287
    %v331 = vpop.permute.xlu0 %330
    %334 = vset.pattern.permute.xlu0 0
    %335 = vperm.xlu0 %334, %v288
    %v336 = vpop.permute.xlu0 %335
    %339 = vset.pattern.permute.xlu0 0
    %340 = vperm.xlu0 %339, %v289
    %v341 = vpop.permute.xlu0 %340
    %344 = vset.pattern.permute.xlu0 0
    %345 = vperm.xlu0 %344, %v290
    %v346 = vpop.permute.xlu0 %345
    %349 = vset.pattern.permute.xlu0 0
    %350 = vperm.xlu0 %349, %v291
    %v351 = vpop.permute.xlu0 %350
    %354 = vset.pattern.permute.xlu0 0
    %355 = vperm.xlu0 %354, %v292
    %v356 = vpop.permute.xlu0 %355
    %359 = vset.pattern.permute.xlu0 0
    %360 = vperm.xlu0 %359, %v293
    %v361 = vpop.permute.xlu0 %360
    %364 = vset.pattern.permute.xlu0 0
    %365 = vperm.xlu0 %364, %v294
    %v366 = vpop.permute.xlu0 %365
    %369 = vset.pattern.permute.xlu0 0
    %370 = vperm.xlu0 %369, %v295
    %v371 = vpop.permute.xlu0 %370
    %374 = vset.pattern.permute.xlu0 0
    %375 = vperm.xlu0 %374, %v296
    %v376 = vpop.permute.xlu0 %375
    %v379 = vperm.slane %v297, 0
    %v381 = vmul.f32 %v301, %v379
    %v382 = vmul.f32 %v306, %v379
    %v383 = vmul.f32 %v311, %v379
    %v384 = vmul.f32 %v316, %v379
    %v385 = vmul.f32 %v321, %v379
    %v386 = vmul.f32 %v326, %v379
    %v387 = vmul.f32 %v331, %v379
    %v388 = vmul.f32 %v336, %v379
    %v389 = vmul.f32 %v341, %v379
    %v390 = vmul.f32 %v346, %v379
    %v391 = vmul.f32 %v351, %v379
    %v392 = vmul.f32 %v356, %v379
    %v393 = vmul.f32 %v361, %v379
    %v394 = vmul.f32 %v366, %v379
    %v395 = vmul.f32 %v371, %v379
    %v396 = vmul.f32 %v376, %v379
    %v397 = vadd.f32 %v234, %v381
    %v398 = vadd.f32 %v237, %v382
    %v399 = vadd.f32 %v240, %v383
    %v400 = vadd.f32 %v243, %v384
    %v401 = vadd.f32 %v246, %v385
    %v402 = vadd.f32 %v249, %v386
    %v403 = vadd.f32 %v252, %v387
    %v404 = vadd.f32 %v255, %v388
    %v405 = vadd.f32 %v258, %v389
    %v406 = vadd.f32 %v261, %v390
    %v407 = vadd.f32 %v264, %v391
    %v408 = vadd.f32 %v267, %v392
    %v409 = vadd.f32 %v270, %v393
    %v410 = vadd.f32 %v273, %v394
    %v411 = vadd.f32 %v276, %v395
    %v412 = vadd.f32 %v279, %v396
    %v413 = vld [vmem:[#allocation2] sm:$0x1]
    %v415 = vperm.slane %v413, 0
    %v417 = vadd.f32 %v397, %v415
    %v418 = vadd.f32 %v398, %v415
    %v419 = vadd.f32 %v399, %v415
    %v420 = vadd.f32 %v400, %v415
    %v421 = vadd.f32 %v401, %v415
    %v422 = vadd.f32 %v402, %v415
    %v423 = vadd.f32 %v403, %v415
    %v424 = vadd.f32 %v404, %v415
    %v425 = vadd.f32 %v405, %v415
    %v426 = vadd.f32 %v406, %v415
    %v427 = vadd.f32 %v407, %v415
    %v428 = vadd.f32 %v408, %v415
    %v429 = vadd.f32 %v409, %v415
    %v430 = vadd.f32 %v410, %v415
    %v431 = vadd.f32 %v411, %v415
    %v432 = vadd.f32 %v412, %v415
    %v433 = vtanh.pop %v417
    %v434 = vtanh.pop %v418
    %v435 = vtanh.pop %v419
    %v436 = vtanh.pop %v420
    %v437 = vtanh.pop %v421
    %v438 = vtanh.pop %v422
    %v439 = vtanh.pop %v423
    %v440 = vtanh.pop %v424
    %v441 = vtanh.pop %v425
    %v442 = vtanh.pop %v426
    %v443 = vtanh.pop %v427
    %v444 = vtanh.pop %v428
    %v445 = vtanh.pop %v429
    %v446 = vtanh.pop %v430
    %v447 = vtanh.pop %v431
    %v448 = vtanh.pop %v432
    %v449 = vld [vmem:[#allocation18] sm:$0x1]
    %450 = vmatpush.xpose.msra.mxu0 %v448
    %451 = vmatpush.xpose.msra.mxu0 %v447
    %452 = vmatpush.xpose.msra.mxu0 %v446
    %453 = vmatpush.xpose.msra.mxu0 %v445
    %454 = vmatpush.xpose.msra.mxu0 %v444
    %455 = vmatpush.xpose.msra.mxu0 %v443
    %456 = vmatpush.xpose.msra.mxu0 %v442
    %457 = vmatpush.xpose.msra.mxu0 %v441
    %458 = vmatpush.xpose.msra.mxu0 %v440
    %459 = vmatpush.xpose.msra.mxu0 %v439
    %460 = vmatpush.xpose.msra.mxu0 %v438
    %461 = vmatpush.xpose.msra.mxu0 %v437
    %462 = vmatpush.xpose.msra.mxu0 %v436
    %463 = vmatpush.xpose.msra.mxu0 %v435
    %464 = vmatpush.xpose.msra.mxu0 %v434
    %465 = vmatpush.xpose.msra.mxu0 %v433
    %466 = vmatmul.f32.gmra.mxu0 %v449
    %v467 = vpop.f32.mrf.mxu0
    %v468 = vadd.f32 0.0, %v467
    %469 = vdwg.mxu0
    %v470 = vlaneseq
    %v471 = vand.u32 %v470, 127
    %s472 = smul.u32 0, 128
    %v473 = vstv %s472
    %v474 = vadd.s32 %v471, %v473
    %vm475 = vcmp.lt.s32.totalorder %v474, 8
    %v476 = vsel %vm475, %v468, -1e+30
    %477 = vst [vmem:[#allocation6] sm:$0x1] %v476
    %v478 = vld [vmem:[#allocation3] sm:$0x1]
    %vm479 = vcmask 1040384
    %v480 = vsel %vm479, %v476, -inf
    %481 = vmax.xlane.f32.xlu0 %v480
    %v482 = vpop.xlane.xlu0 %481
    %v483 = vmax.f32 %v478, %v482
    %v484 = vsub.f32 %v478, %v483
    %v485 = vmul.f32 %v484, 1.442695
    %v486 = vpow.pop %v485
    %488 = vset.pattern.permute.xlu0 0
    %489 = vperm.xlu0 %488, %v483
    %v490 = vpop.permute.xlu0 %489
    %v492 = vperm.slane %v490, 0
    %v493 = vsub.f32 %v476, %v492
    %v494 = vmul.f32 %v493, 1.442695
    %v495 = vpow.pop %v494
    %v496 = vld [vmem:[#allocation4] sm:$0x1]
    %v497 = vmul.f32 %v486, %v496
    %v498 = vsel %vm479, %v495, 0.0
    %499 = vadd.xlane.f32.xlu0 %v498
    %v500 = vpop.xlane.xlu0 %499
    %v501 = vadd.f32 %v497, %v500
    %vm502 = vcmask 0
    %503 = vst.msk [vmem:[#allocation4] sm:$0x1] %vm502, %v501
    %v504 = vld [vmem:[#allocation5] sm:$0x1]
    %506 = vset.pattern.permute.xlu0 0
    %507 = vperm.xlu0 %506, %v486
    %v508 = vpop.permute.xlu0 %507
    %v510 = vperm.slane %v508, 0
    %v511 = vmul.f32 %v510, %v504
    %512 = vmatpush.msra.mxu0 %v279
    %513 = vmatpush.msra.mxu0 %v276
    %514 = vmatpush.msra.mxu0 %v273
    %515 = vmatpush.msra.mxu0 %v270
    %516 = vmatpush.msra.mxu0 %v267
    %517 = vmatpush.msra.mxu0 %v264
    %518 = vmatpush.msra.mxu0 %v261
    %519 = vmatpush.msra.mxu0 %v258
    %520 = vmatpush.msra.mxu0 %v255
    %521 = vmatpush.msra.mxu0 %v252
    %522 = vmatpush.msra.mxu0 %v249
    %523 = vmatpush.msra.mxu0 %v246
    %524 = vmatpush.msra.mxu0 %v243
    %525 = vmatpush.msra.mxu0 %v240
    %526 = vmatpush.msra.mxu0 %v237
    %527 = vmatpush.msra.mxu0 %v234
    %528 = vmatmul.f32.gmra.mxu0 %v495
    %v529 = vpop.f32.mrf.mxu0
    %v530 = vadd.f32 0.0, %v529
    %531 = vdwg.mxu0
    %v532 = vadd.f32 %v511, %v530
    %533 = vst [vmem:[#allocation5] sm:$0x1] %v532
    %534 = vst.msk [vmem:[#allocation3] sm:$0x1] %vm502, %v483
    // Predicated region
    $region78: #{tpu_custom_call.1} parent=1 // pred_check
      %p535 = pneg %p141
    $region79: #{tpu_custom_call.1} parent=1 // pred_check_branch
      %537 = sbr.rel (%p535) target = $region81
    $region80: #{tpu_custom_call.1} parent=1 // pred_region
      %v538 = vld [vmem:[#allocation4] sm:$0x1]
      %v539 = vrcp.pop %v538
      %v540 = vmul.f32 %v538, %v539
      %v541 = vsub.f32 1.0, %v540
      %v542 = vmul.f32 %v539, %v541
      %v543 = vadd.f32 %v539, %v542
      %vm544 = vweird.f32 %v538
      %vm545 = vweird.f32 %v539
      %vm546 = vmor %vm544, %vm545
      %v547 = vsel %vm546, %v539, %v543
      %v548 = vand.u32 2147483647, %v538
      %vm549 = vcmp.eq.f32.partialorder %v548, 8.507059e+37
      %v550 = vand.u32 %v538, 2147483648
      %v551 = vor.u32 1.1754944e-38, %v550
      %v552 = vsel %vm549, %v551, %v547
      %v553 = vmul.f32 1.0, %v552
      %v554 = vld [vmem:[#allocation6] sm:$0x1]
      %v555 = vld [vmem:[#allocation3] sm:$0x1]
      %557 = vset.pattern.permute.xlu0 0
      %558 = vperm.xlu0 %557, %v555
      %v559 = vpop.permute.xlu0 %558
      %v561 = vperm.slane %v559, 0
      %v562 = vsub.f32 %v554, %v561
      %v563 = vmul.f32 %v562, 1.442695
      %v564 = vpow.pop %v563
      %566 = vset.pattern.permute.xlu0 0
      %567 = vperm.xlu0 %566, %v553
      %v568 = vpop.permute.xlu0 %567
      %v570 = vperm.slane %v568, 0
      %v571 = vmul.f32 %v564, %v570
      %v572 = vld [vmem:[#allocation7] sm:$0x1]
      %v573 = vadd.f32 %v572, %v571
      %574 = vst [vmem:[#allocation20] sm:$0x1] %v573
      %v575 = vld [vmem:[#allocation5] sm:$0x1]
      %v576 = vmul.f32 %v575, %v570
      %v577 = vld [vmem:[%s5] sm:$0x1]
      %v578 = vadd.f32 %v576, %v577
      %579 = vst [vmem:[#allocation19] sm:$0x1] %v578
    $region81: #{tpu_custom_call.1} parent=1 // pred_fallthru
      _
    // Predicated region
    $region82: #{tpu_custom_call.1} parent=1 // pred_check
      _
    $region83: #{tpu_custom_call.1} parent=1 // pred_check_branch
      %581 = sbr.rel (0) target = $region85
    $region84: #{tpu_custom_call.1} parent=1 // pred_region
      %583 = vsyncadd [#allocation9], 0
      %s585 = sshll.u32 [#allocation19], 4
      %s586 = int_to_ptr.vmem [resolvable:$true] %s585
      %s587 = sshll.u32 %s11, 4
      %s588 = int_to_ptr.hbm [resolvable:$true] %s587
      %590 = dma.vmem_to_hbm [thread:$0]  %s586, 16, %s588, [#allocation9]
    $region85: #{tpu_custom_call.1} parent=1 // pred_fallthru
      _
    // Predicated region
    $region86: #{tpu_custom_call.1} parent=1 // pred_check
      _
    $region87: #{tpu_custom_call.1} parent=1 // pred_check_branch
      %592 = sbr.rel (0) target = $region89
    $region88: #{tpu_custom_call.1} parent=1 // pred_region
      %594 = vsyncadd [#allocation21], 0
      %s596 = sshll.u32 [#allocation20], 4
      %s597 = int_to_ptr.vmem [resolvable:$true] %s596
      %s598 = sshll.u32 %s12, 4
      %s599 = int_to_ptr.hbm [resolvable:$true] %s598
      %601 = dma.vmem_to_hbm [thread:$0]  %s597, 16, %s599, [#allocation21]
    $region89: #{tpu_custom_call.1} parent=1 // pred_fallthru
      _
    // Predicated region
    $region90: #{tpu_custom_call.1} parent=1 // pred_check
      _
    $region91: #{tpu_custom_call.1} parent=1 // pred_check_branch
      %603 = sbr.rel (0) target = $region93
    $region92: #{tpu_custom_call.1} parent=1 // pred_region
      %605 = dma.done [#allocation9], 16
    $region93: #{tpu_custom_call.1} parent=1 // pred_fallthru
      _
    // Predicated region
    $region94: #{tpu_custom_call.1} parent=1 // pred_check
      _
    $region95: #{tpu_custom_call.1} parent=1 // pred_check_branch
      %607 = sbr.rel (0) target = $region97
    $region96: #{tpu_custom_call.1} parent=1 // pred_region
      %609 = dma.done [#allocation21], 16
    $region97: #{tpu_custom_call.1} parent=1 // pred_fallthru
      _
    %610 = vsyncpa [#allocation8], 1
    %611 = vsyncpa [#allocation11], 1
    %612 = vsyncpa [#allocation14], 1
    %613 = vsyncpa [#allocation17], 1
    %614 = vsyncpa [#allocation9], 1
    %615 = vsyncpa [#allocation21], 1

</llo_original>
